<compile_context>
chip_gen: v7x
topology: tpu7x:2x2x1
jax: 0.10.0
libtpu: 0.0.40
codegen_flags: <defaults>
</compile_context>

<pallas_src>
import functools

import jax
import jax.numpy as jnp
from jax.experimental import pallas as pl
from jax.experimental.pallas import tpu as pltpu

LANE = 128     # vreg lane width (last dim)
SUBLANE = 8    # vreg sublane width (second-to-last dim)


def _round_up(n, m):
    return (n + m - 1) // m * m


def _make_actor_kernel(compute_dtype):
    """3-layer MLP fused into one kernel; matmuls in `compute_dtype`, f32 accum."""

    def actor_kernel(x_ref, w1_ref, b1_ref, w2_ref, b2_ref, w3_ref, b3_ref, o_ref):
        # layer 1: relu(x @ W1 + b1)     (x already cast to compute_dtype outside)
        h = jnp.dot(x_ref[...], w1_ref[...], preferred_element_type=jnp.float32)
        h = jnp.maximum(h + b1_ref[...], 0.0)
        # layer 2: relu(h @ W2 + b2)
        h = jnp.dot(h.astype(compute_dtype), w2_ref[...],
                    preferred_element_type=jnp.float32)
        h = jnp.maximum(h + b2_ref[...], 0.0)
        # layer 3: tanh(h @ W3 + b3)     (tanh goes to the EUP slot)
        h = jnp.dot(h.astype(compute_dtype), w3_ref[...],
                    preferred_element_type=jnp.float32)
        o_ref[...] = jnp.tanh(h + b3_ref[...]).astype(o_ref.dtype)

    return actor_kernel


def actor_forward(x, params, *, block_b=256, compute_dtype=jnp.bfloat16):
    """Forward pass of the Actor MLP.

    x: [B, state_size] f32.  params: dict w1,b1,w2,b2,w3,b3 with w* as [in, out].
    Returns [B, action_size] f32.
    """
    w1, b1, w2, b2, w3, b3 = (params[k] for k in ("w1", "b1", "w2", "b2", "w3", "b3"))
    B, S = x.shape
    H = w1.shape[1]
    A = w3.shape[1]

    # ---- lane-dense padded sizes ------------------------------------------
    Sp = _round_up(S, LANE)
    Hp = _round_up(H, LANE)
    Ap = _round_up(A, LANE)

    # batch tile (multiple of 8 sublanes, divides the padded batch)
    tb = _round_up(min(block_b, _round_up(B, SUBLANE)), SUBLANE)
    Bp = _round_up(B, tb)

    # ---- zero-pad (zeros in padded rows/cols keep the math exact) ---------
    cd = compute_dtype
    x_p = jnp.pad(x, ((0, Bp - B), (0, Sp - S))).astype(cd)
    w1_p = jnp.pad(w1, ((0, Sp - S), (0, Hp - H))).astype(cd)
    w2_p = jnp.pad(w2, ((0, Hp - H), (0, Hp - H))).astype(cd)
    w3_p = jnp.pad(w3, ((0, Hp - H), (0, Ap - A))).astype(cd)
    b1_p = jnp.pad(b1, ((0, 0), (0, Hp - H))).astype(jnp.float32)
    b2_p = jnp.pad(b2, ((0, 0), (0, Hp - H))).astype(jnp.float32)
    b3_p = jnp.pad(b3, ((0, 0), (0, Ap - A))).astype(jnp.float32)

    grid = (Bp // tb,)
    const = lambda shape: pl.BlockSpec(shape, lambda i: (0, 0))  # VMEM-resident

    out_p = pl.pallas_call(
        _make_actor_kernel(cd),
        out_shape=jax.ShapeDtypeStruct((Bp, Ap), jnp.float32),
        grid_spec=pltpu.PrefetchScalarGridSpec(
            num_scalar_prefetch=0,
            grid=grid,
            in_specs=[
                pl.BlockSpec((tb, Sp), lambda i: (i, 0)),   # x: batch-tiled
                const((Sp, Hp)), const((1, Hp)),            # w1, b1
                const((Hp, Hp)), const((1, Hp)),            # w2, b2
                const((Hp, Ap)), const((1, Ap)),            # w3, b3
            ],
            out_specs=pl.BlockSpec((tb, Ap), lambda i: (i, 0)),
        ),
        compiler_params=pltpu.CompilerParams(
            dimension_semantics=("parallel",),              # 2 TCs on v7x
        ),
    )(x_p, w1_p, b1_p, w2_p, b2_p, w3_p, b3_p)

    # slice the zero-padded rows / action columns back off
    return out_p[:B, :A]


def init_actor_params(key, state_size, action_size, hidden_size=256):
    """Deterministic init mimicking nn.Linear's default U(-1/sqrt(fan_in), +...)."""
    keys = jax.random.split(key, 6)

    def linear(kw, kb, fan_in, fan_out):
        bound = 1.0 / jnp.sqrt(jnp.float32(fan_in))
        # stored as [in, out] so the kernel does x @ W
        w = jax.random.uniform(kw, (fan_in, fan_out), jnp.float32, -bound, bound)
        b = jax.random.uniform(kb, (1, fan_out), jnp.float32, -bound, bound)
        return w, b

    w1, b1 = linear(keys[0], keys[1], state_size, hidden_size)
    w2, b2 = linear(keys[2], keys[3], hidden_size, hidden_size)
    w3, b3 = linear(keys[4], keys[5], hidden_size, action_size)
    return dict(w1=w1, b1=b1, w2=w2, b2=b2, w3=w3, b3=b3)


def actor_reference(x, p, compute_dtype=jnp.float32):
    """Pure-JAX reference with the same numeric policy as the kernel."""
    cd = compute_dtype

    def layer(h, w, b):
        return jnp.dot(h.astype(cd), w.astype(cd),
                       preferred_element_type=jnp.float32) + b

    h = jnp.maximum(layer(x, p["w1"], p["b1"]), 0.0)
    h = jnp.maximum(layer(h, p["w2"], p["b2"]), 0.0)
    return jnp.tanh(layer(h, p["w3"], p["b3"]))


if __name__ == "__main__":
    # module-consistent shapes: hidden_size uses the PyTorch default (256);
    # batch / state / action are small and intentionally NOT multiples of 8/128
    # to exercise the padding + slicing path.
    batch, state_size, action_size, hidden_size = 500, 24, 4, 256

    key = jax.random.PRNGKey(0)
    kx, kp = jax.random.split(key)
    x = jax.random.normal(kx, (batch, state_size), jnp.float32)
    params = init_actor_params(kp, state_size, action_size, hidden_size)

    fwd = jax.jit(functools.partial(actor_forward,
                                    block_b=128, compute_dtype=jnp.bfloat16))
    out = jax.block_until_ready(fwd(x, params))

    ref = actor_reference(x, params, compute_dtype=jnp.bfloat16)
    assert out.shape == (batch, action_size)
    assert out.dtype == jnp.float32
    assert jnp.allclose(out, ref, atol=1e-3, rtol=1e-3), float(
        jnp.max(jnp.abs(out - ref)))
    print("KERNEL_OK")
</pallas_src>

<mosaic_0001>
module attributes {stable_mosaic.version = 11 : i64} {
  func.func @actor_kernel(%arg0: i32, %arg1: memref<128x128xbf16, #tpu.memory_space<vmem>>, %arg2: memref<128x256xbf16, #tpu.memory_space<vmem>>, %arg3: memref<1x256xf32, #tpu.memory_space<vmem>>, %arg4: memref<256x256xbf16, #tpu.memory_space<vmem>>, %arg5: memref<1x256xf32, #tpu.memory_space<vmem>>, %arg6: memref<256x128xbf16, #tpu.memory_space<vmem>>, %arg7: memref<1x128xf32, #tpu.memory_space<vmem>>, %arg8: memref<128x128xf32, #tpu.memory_space<vmem>>) attributes {dimension_semantics = [#tpu.dimension_semantics<parallel>], iteration_bounds = array<i64: 4>, scalar_prefetch = 0 : i64, scratch_operands = 0 : i64, tpu.core_type = #tpu.core_type<tc>, window_params = [{transform_indices = @transform_0, window_bounds = array<i64: 128, 128>}, {pipeline_mode = #tpu.pipeline_mode<synchronous>, transform_indices = @transform_1, window_bounds = array<i64: 128, 256>}, {pipeline_mode = #tpu.pipeline_mode<synchronous>, transform_indices = @transform_2, window_bounds = array<i64: 1, 256>}, {pipeline_mode = #tpu.pipeline_mode<synchronous>, transform_indices = @transform_3, window_bounds = array<i64: 256, 256>}, {pipeline_mode = #tpu.pipeline_mode<synchronous>, transform_indices = @transform_4, window_bounds = array<i64: 1, 256>}, {pipeline_mode = #tpu.pipeline_mode<synchronous>, transform_indices = @transform_5, window_bounds = array<i64: 256, 128>}, {pipeline_mode = #tpu.pipeline_mode<synchronous>, transform_indices = @transform_6, window_bounds = array<i64: 1, 128>}, {transform_indices = @transform_7, window_bounds = array<i64: 128, 128>}]} {
    %c0 = arith.constant 0 : index
    %c0_0 = arith.constant 0 : index
    %0 = vector.load %arg1[%c0, %c0_0] : memref<128x128xbf16, #tpu.memory_space<vmem>>, vector<128x128xbf16>
    %c0_1 = arith.constant 0 : index
    %c0_2 = arith.constant 0 : index
    %1 = vector.load %arg2[%c0_1, %c0_2] : memref<128x256xbf16, #tpu.memory_space<vmem>>, vector<128x256xbf16>
    %cst = arith.constant dense<0.000000e+00> : vector<128x256xf32>
    %2 = tpu.matmul %0, %1, %cst {dimension_numbers = #tpu.dot_dimension_numbers<[1], [0], [0], [1], [0, 0, 1, 1], [], []>} : vector<128x128xbf16>, vector<128x256xbf16>, vector<128x256xf32> -> vector<128x256xf32>
    %c0_3 = arith.constant 0 : index
    %c0_4 = arith.constant 0 : index
    %3 = vector.load %arg3[%c0_3, %c0_4] : memref<1x256xf32, #tpu.memory_space<vmem>>, vector<1x256xf32>
    %4 = vector.broadcast %3 : vector<1x256xf32> to vector<128x256xf32>
    %5 = arith.addf %2, %4 : vector<128x256xf32>
    %cst_5 = arith.constant 0.000000e+00 : f32
    %6 = vector.broadcast %cst_5 : f32 to vector<128x256xf32>
    %7 = arith.maximumf %5, %6 : vector<128x256xf32>
    %8 = arith.truncf %7 : vector<128x256xf32> to vector<128x256xbf16>
    %c0_6 = arith.constant 0 : index
    %c0_7 = arith.constant 0 : index
    %9 = vector.load %arg4[%c0_6, %c0_7] : memref<256x256xbf16, #tpu.memory_space<vmem>>, vector<256x256xbf16>
    %cst_8 = arith.constant dense<0.000000e+00> : vector<128x256xf32>
    %10 = tpu.matmul %8, %9, %cst_8 {dimension_numbers = #tpu.dot_dimension_numbers<[1], [0], [0], [1], [0, 0, 1, 1], [], []>} : vector<128x256xbf16>, vector<256x256xbf16>, vector<128x256xf32> -> vector<128x256xf32>
    %c0_9 = arith.constant 0 : index
    %c0_10 = arith.constant 0 : index
    %11 = vector.load %arg5[%c0_9, %c0_10] : memref<1x256xf32, #tpu.memory_space<vmem>>, vector<1x256xf32>
    %12 = vector.broadcast %11 : vector<1x256xf32> to vector<128x256xf32>
    %13 = arith.addf %10, %12 : vector<128x256xf32>
    %cst_11 = arith.constant 0.000000e+00 : f32
    %14 = vector.broadcast %cst_11 : f32 to vector<128x256xf32>
    %15 = arith.maximumf %13, %14 : vector<128x256xf32>
    %16 = arith.truncf %15 : vector<128x256xf32> to vector<128x256xbf16>
    %c0_12 = arith.constant 0 : index
    %c0_13 = arith.constant 0 : index
    %17 = vector.load %arg6[%c0_12, %c0_13] : memref<256x128xbf16, #tpu.memory_space<vmem>>, vector<256x128xbf16>
    %cst_14 = arith.constant dense<0.000000e+00> : vector<128x128xf32>
    %18 = tpu.matmul %16, %17, %cst_14 {dimension_numbers = #tpu.dot_dimension_numbers<[1], [0], [0], [1], [0, 0, 1, 1], [], []>} : vector<128x256xbf16>, vector<256x128xbf16>, vector<128x128xf32> -> vector<128x128xf32>
    %c0_15 = arith.constant 0 : index
    %c0_16 = arith.constant 0 : index
    %19 = vector.load %arg7[%c0_15, %c0_16] : memref<1x128xf32, #tpu.memory_space<vmem>>, vector<1x128xf32>
    %20 = vector.broadcast %19 : vector<1x128xf32> to vector<128x128xf32>
    %21 = arith.addf %18, %20 : vector<128x128xf32>
    %22 = math.tanh %21 : vector<128x128xf32>
    %c0_17 = arith.constant 0 : index
    %c0_18 = arith.constant 0 : index
    %23 = vector.load %arg8[%c0_17, %c0_18] : memref<128x128xf32, #tpu.memory_space<vmem>>, vector<128x128xf32>
    tpu.vector_store %arg8[%c0_17, %c0_18], %22 {strides = array<i32>} : memref<128x128xf32, #tpu.memory_space<vmem>>, vector<128x128xf32>,
    return
  }
  func.func @transform_0(%arg0: i32) -> (i32, i32) {
    %c0_i32 = arith.constant 0 : i32
    %c0_i32_0 = arith.constant 0 : i32
    return %arg0, %c0_i32 : i32, i32
  }
  func.func @transform_1(%arg0: i32) -> (i32, i32) {
    %c0_i32 = arith.constant 0 : i32
    %c0_i32_0 = arith.constant 0 : i32
    %c0_i32_1 = arith.constant 0 : i32
    return %c0_i32, %c0_i32_0 : i32, i32
  }
  func.func @transform_2(%arg0: i32) -> (i32, i32) {
    %c0_i32 = arith.constant 0 : i32
    %c0_i32_0 = arith.constant 0 : i32
    %c0_i32_1 = arith.constant 0 : i32
    return %c0_i32, %c0_i32_0 : i32, i32
  }
  func.func @transform_3(%arg0: i32) -> (i32, i32) {
    %c0_i32 = arith.constant 0 : i32
    %c0_i32_0 = arith.constant 0 : i32
    %c0_i32_1 = arith.constant 0 : i32
    return %c0_i32, %c0_i32_0 : i32, i32
  }
  func.func @transform_4(%arg0: i32) -> (i32, i32) {
    %c0_i32 = arith.constant 0 : i32
    %c0_i32_0 = arith.constant 0 : i32
    %c0_i32_1 = arith.constant 0 : i32
    return %c0_i32, %c0_i32_0 : i32, i32
  }
  func.func @transform_5(%arg0: i32) -> (i32, i32) {
    %c0_i32 = arith.constant 0 : i32
    %c0_i32_0 = arith.constant 0 : i32
    %c0_i32_1 = arith.constant 0 : i32
    return %c0_i32, %c0_i32_0 : i32, i32
  }
  func.func @transform_6(%arg0: i32) -> (i32, i32) {
    %c0_i32 = arith.constant 0 : i32
    %c0_i32_0 = arith.constant 0 : i32
    %c0_i32_1 = arith.constant 0 : i32
    return %c0_i32, %c0_i32_0 : i32, i32
  }
  func.func @transform_7(%arg0: i32) -> (i32, i32) {
    %c0_i32 = arith.constant 0 : i32
    %c0_i32_0 = arith.constant 0 : i32
    return %arg0, %c0_i32 : i32, i32
  }
}

</mosaic_0001>

<llo_original>
// kernel: actor_forward.1
$region0: #{actor_forward.1}
  #allocation0 [shape = 'u32[]', space=smem, size = 0x4, offset = 0x4, fixed_abs, tag = 'smem constant byte address 0x4 - core index']
  #allocation1 [shape = 'u32[144,128]{1,0:T(1,128)}', space=vmem, size = 0x12000, scoped, tag = 'internal scratch']
  %s0 = inlined_call_operand.vmem [shape: bf16[512,128], index: 0, kind: input, shape index: {}]
  %s1 = inlined_call_operand.vmem [shape: bf16[128,256], index: 1, kind: input, shape index: {}]
  %s2 = inlined_call_operand.vmem [shape: f32[1,256], index: 2, kind: input, shape index: {}]
  %s3 = inlined_call_operand.vmem [shape: bf16[256,256], index: 3, kind: input, shape index: {}]
  %s4 = inlined_call_operand.vmem [shape: f32[1,256], index: 4, kind: input, shape index: {}]
  %s5 = inlined_call_operand.vmem [shape: bf16[256,128], index: 5, kind: input, shape index: {}]
  %s6 = inlined_call_operand.vmem [shape: f32[1,128], index: 6, kind: input, shape index: {}]
  %s7 = inlined_call_operand.vmem [shape: f32[512,128], index: 7, kind: output, shape index: {}]
  %s8 = sld [smem:[#allocation0]]
  $region61: #{actor_forward.1} parent=0
    _
  %s10 = ssub.s32 1, %s8
  %s11 = scalar_select 0, %s10, %s8
  loop: start=0, step=1, limit=6
  $region2: #{actor_forward.1} parent=0 // loop_pre_header
    _
  $region3: #{actor_forward.1} parent=0 // loop_header
    %s13 = sphi 0, %s17
    %p14 = scmp.ge.s32.totalorder %s13, 6
    %s23 = sphi 0, %s25
    %s26 = sphi 0, %s23
    %s27 = sphi 0, %s26
    %s43 = sphi 0, %s27
    %s47 = sphi 0, %s47
    %s49 = sphi 0, %s47
    %s50 = sphi 0, %s49
    %s64 = sphi 0, %s50
    %s68 = sphi 0, %s68
    %s70 = sphi 0, %s68
    %s71 = sphi 0, %s70
    %s85 = sphi 0, %s71
    %s89 = sphi 0, %s89
    %s91 = sphi 0, %s89
    %s92 = sphi 0, %s91
    %s106 = sphi 0, %s92
    %s110 = sphi 0, %s110
    %s112 = sphi 0, %s110
    %s113 = sphi 0, %s112
    %s127 = sphi 0, %s113
    %s131 = sphi 0, %s131
    %s133 = sphi 0, %s131
    %s134 = sphi 0, %s133
    %s148 = sphi 0, %s134
    %s152 = sphi 0, %s152
    %s154 = sphi 0, %s152
    %s155 = sphi 0, %s154
    %s169 = sphi 0, %s155
    %s175 = sphi 0, %s177
    %s178 = sphi 0, %s175
    %s179 = sphi 0, %s178
    %s195 = sphi 0, %s179
  $region4: #{actor_forward.1} parent=0 // loop_header_branch
    %16 = sbr.rel (%p14) target = $region8
  $region5: #{actor_forward.1} parent=0 // loop_body
    %s18 = ssub.s32 %s13, 1
    %s19 = ssub.s32 %s13, 2
    %s20 = sadd.s32 %s13, 1
    %s21 = ssub.s32 %s13, %s20
    %p22 = scmp.eq.s32.totalorder %s21, 0
    %s24 = sadd.s32 %s23, 1
    %s25 = scalar_select %p22, %s23, %s24
    %p28 = pneg %p22
    %p29 = scmp.eq.s32.totalorder %s13, 3
    %p30 = por %p28, %p29
    %p31 = scmp.ne.s32.totalorder %s23, %s26
    %p32 = scmp.eq.s32.totalorder %s13, 0
    %p33 = por %p31, %p32
    %p34 = scmp.ne.s32.totalorder %s23, %s26
    %p35 = scmp.eq.s32.totalorder %s18, 3
    %p36 = por %p34, %p35
    %p37 = scmp.ne.s32.totalorder %s26, %s27
    %p38 = scmp.eq.s32.totalorder %s18, 0
    %p39 = por %p37, %p38
    %p40 = scmp.ne.s32.totalorder %s26, %s27
    %p41 = scmp.eq.s32.totalorder %s19, 3
    %p42 = por %p40, %p41
    %p44 = scmp.ne.s32.totalorder %s27, %s43
    %p45 = scmp.eq.s32.totalorder %s19, 0
    %p46 = por %p44, %p45
    %s48 = sadd.s32 %s47, 1
    %p51 = scmp.eq.s32.totalorder %s13, 3
    %p52 = scmp.ne.s32.totalorder %s47, %s49
    %p53 = scmp.eq.s32.totalorder %s13, 0
    %p54 = por %p52, %p53
    %p55 = scmp.ne.s32.totalorder %s47, %s49
    %p56 = scmp.eq.s32.totalorder %s18, 3
    %p57 = por %p55, %p56
    %p58 = scmp.ne.s32.totalorder %s49, %s50
    %p59 = scmp.eq.s32.totalorder %s18, 0
    %p60 = por %p58, %p59
    %p61 = scmp.ne.s32.totalorder %s49, %s50
    %p62 = scmp.eq.s32.totalorder %s19, 3
    %p63 = por %p61, %p62
    %p65 = scmp.ne.s32.totalorder %s50, %s64
    %p66 = scmp.eq.s32.totalorder %s19, 0
    %p67 = por %p65, %p66
    %s69 = sadd.s32 %s68, 1
    %p72 = scmp.eq.s32.totalorder %s13, 3
    %p73 = scmp.ne.s32.totalorder %s68, %s70
    %p74 = scmp.eq.s32.totalorder %s13, 0
    %p75 = por %p73, %p74
    %p76 = scmp.ne.s32.totalorder %s68, %s70
    %p77 = scmp.eq.s32.totalorder %s18, 3
    %p78 = por %p76, %p77
    %p79 = scmp.ne.s32.totalorder %s70, %s71
    %p80 = scmp.eq.s32.totalorder %s18, 0
    %p81 = por %p79, %p80
    %p82 = scmp.ne.s32.totalorder %s70, %s71
    %p83 = scmp.eq.s32.totalorder %s19, 3
    %p84 = por %p82, %p83
    %p86 = scmp.ne.s32.totalorder %s71, %s85
    %p87 = scmp.eq.s32.totalorder %s19, 0
    %p88 = por %p86, %p87
    %s90 = sadd.s32 %s89, 1
    %p93 = scmp.eq.s32.totalorder %s13, 3
    %p94 = scmp.ne.s32.totalorder %s89, %s91
    %p95 = scmp.eq.s32.totalorder %s13, 0
    %p96 = por %p94, %p95
    %p97 = scmp.ne.s32.totalorder %s89, %s91
    %p98 = scmp.eq.s32.totalorder %s18, 3
    %p99 = por %p97, %p98
    %p100 = scmp.ne.s32.totalorder %s91, %s92
    %p101 = scmp.eq.s32.totalorder %s18, 0
    %p102 = por %p100, %p101
    %p103 = scmp.ne.s32.totalorder %s91, %s92
    %p104 = scmp.eq.s32.totalorder %s19, 3
    %p105 = por %p103, %p104
    %p107 = scmp.ne.s32.totalorder %s92, %s106
    %p108 = scmp.eq.s32.totalorder %s19, 0
    %p109 = por %p107, %p108
    %s111 = sadd.s32 %s110, 1
    %p114 = scmp.eq.s32.totalorder %s13, 3
    %p115 = scmp.ne.s32.totalorder %s110, %s112
    %p116 = scmp.eq.s32.totalorder %s13, 0
    %p117 = por %p115, %p116
    %p118 = scmp.ne.s32.totalorder %s110, %s112
    %p119 = scmp.eq.s32.totalorder %s18, 3
    %p120 = por %p118, %p119
    %p121 = scmp.ne.s32.totalorder %s112, %s113
    %p122 = scmp.eq.s32.totalorder %s18, 0
    %p123 = por %p121, %p122
    %p124 = scmp.ne.s32.totalorder %s112, %s113
    %p125 = scmp.eq.s32.totalorder %s19, 3
    %p126 = por %p124, %p125
    %p128 = scmp.ne.s32.totalorder %s113, %s127
    %p129 = scmp.eq.s32.totalorder %s19, 0
    %p130 = por %p128, %p129
    %s132 = sadd.s32 %s131, 1
    %p135 = scmp.eq.s32.totalorder %s13, 3
    %p136 = scmp.ne.s32.totalorder %s131, %s133
    %p137 = scmp.eq.s32.totalorder %s13, 0
    %p138 = por %p136, %p137
    %p139 = scmp.ne.s32.totalorder %s131, %s133
    %p140 = scmp.eq.s32.totalorder %s18, 3
    %p141 = por %p139, %p140
    %p142 = scmp.ne.s32.totalorder %s133, %s134
    %p143 = scmp.eq.s32.totalorder %s18, 0
    %p144 = por %p142, %p143
    %p145 = scmp.ne.s32.totalorder %s133, %s134
    %p146 = scmp.eq.s32.totalorder %s19, 3
    %p147 = por %p145, %p146
    %p149 = scmp.ne.s32.totalorder %s134, %s148
    %p150 = scmp.eq.s32.totalorder %s19, 0
    %p151 = por %p149, %p150
    %s153 = sadd.s32 %s152, 1
    %p156 = scmp.eq.s32.totalorder %s13, 3
    %p157 = scmp.ne.s32.totalorder %s152, %s154
    %p158 = scmp.eq.s32.totalorder %s13, 0
    %p159 = por %p157, %p158
    %p160 = scmp.ne.s32.totalorder %s152, %s154
    %p161 = scmp.eq.s32.totalorder %s18, 3
    %p162 = por %p160, %p161
    %p163 = scmp.ne.s32.totalorder %s154, %s155
    %p164 = scmp.eq.s32.totalorder %s18, 0
    %p165 = por %p163, %p164
    %p166 = scmp.ne.s32.totalorder %s154, %s155
    %p167 = scmp.eq.s32.totalorder %s19, 3
    %p168 = por %p166, %p167
    %p170 = scmp.ne.s32.totalorder %s155, %s169
    %p171 = scmp.eq.s32.totalorder %s19, 0
    %p172 = por %p170, %p171
    %s173 = ssub.s32 %s13, %s20
    %p174 = scmp.eq.s32.totalorder %s173, 0
    %s176 = sadd.s32 %s175, 1
    %s177 = scalar_select %p174, %s175, %s176
    %p180 = pneg %p174
    %p181 = scmp.eq.s32.totalorder %s13, 3
    %p182 = por %p180, %p181
    %p183 = scmp.ne.s32.totalorder %s175, %s178
    %p184 = scmp.eq.s32.totalorder %s13, 0
    %p185 = por %p183, %p184
    %p186 = scmp.ne.s32.totalorder %s175, %s178
    %p187 = scmp.eq.s32.totalorder %s18, 3
    %p188 = por %p186, %p187
    %p189 = scmp.ne.s32.totalorder %s178, %s179
    %p190 = scmp.eq.s32.totalorder %s18, 0
    %p191 = por %p189, %p190
    %p192 = scmp.ne.s32.totalorder %s178, %s179
    %p193 = scmp.eq.s32.totalorder %s19, 3
    %p194 = por %p192, %p193
    %p196 = scmp.ne.s32.totalorder %s179, %s195
    %p197 = scmp.eq.s32.totalorder %s19, 0
    %p198 = por %p196, %p197
    %p199 = scmp.le.s32.totalorder 1, %s13
    %p200 = scmp.lt.s32.totalorder %s13, 5
    %p201 = pnand %p199, %p200
    %p202 = pneg %p201
    // Predicated region
    $region9: #{actor_forward.1} parent=5 // pred_check
      _
    $region10: #{actor_forward.1} parent=5 // pred_check_branch
      %204 = sbr.rel (%p201) target = $region12
    $region11: #{actor_forward.1} parent=5 // pred_region
      %s205 = ssub.s32 %s13, 1
      // Predicated region
      $region13: #{actor_forward.1} parent=11 // pred_check
        %p206 = pneg %p60
      $region14: #{actor_forward.1} parent=11 // pred_check_branch
        %208 = sbr.rel (%p206) target = $region16
      $region15: #{actor_forward.1} parent=11 // pred_region
        _
      $region16: #{actor_forward.1} parent=11 // pred_fallthru
        _
      // Predicated region
      $region17: #{actor_forward.1} parent=11 // pred_check
        %p209 = pneg %p81
      $region18: #{actor_forward.1} parent=11 // pred_check_branch
        %211 = sbr.rel (%p209) target = $region20
      $region19: #{actor_forward.1} parent=11 // pred_region
        _
      $region20: #{actor_forward.1} parent=11 // pred_fallthru
        _
      // Predicated region
      $region21: #{actor_forward.1} parent=11 // pred_check
        %p212 = pneg %p102
      $region22: #{actor_forward.1} parent=11 // pred_check_branch
        %214 = sbr.rel (%p212) target = $region24
      $region23: #{actor_forward.1} parent=11 // pred_region
        _
      $region24: #{actor_forward.1} parent=11 // pred_fallthru
        _
      // Predicated region
      $region25: #{actor_forward.1} parent=11 // pred_check
        %p215 = pneg %p123
      $region26: #{actor_forward.1} parent=11 // pred_check_branch
        %217 = sbr.rel (%p215) target = $region28
      $region27: #{actor_forward.1} parent=11 // pred_region
        _
      $region28: #{actor_forward.1} parent=11 // pred_fallthru
        _
      // Predicated region
      $region29: #{actor_forward.1} parent=11 // pred_check
        %p218 = pneg %p144
      $region30: #{actor_forward.1} parent=11 // pred_check_branch
        %220 = sbr.rel (%p218) target = $region32
      $region31: #{actor_forward.1} parent=11 // pred_region
        _
      $region32: #{actor_forward.1} parent=11 // pred_fallthru
        _
      // Predicated region
      $region33: #{actor_forward.1} parent=11 // pred_check
        %p221 = pneg %p165
      $region34: #{actor_forward.1} parent=11 // pred_check_branch
        %223 = sbr.rel (%p221) target = $region36
      $region35: #{actor_forward.1} parent=11 // pred_region
        _
      $region36: #{actor_forward.1} parent=11 // pred_fallthru
        _
    $region12: #{actor_forward.1} parent=5 // pred_fallthru
      _
    %p224 = scmp.lt.s32.totalorder %s13, 4
    // Predicated region
    $region37: #{actor_forward.1} parent=5 // pred_check
      %p225 = pneg %p224
    $region38: #{actor_forward.1} parent=5 // pred_check_branch
      %227 = sbr.rel (%p225) target = $region40
    $region39: #{actor_forward.1} parent=5 // pred_region
      // Predicated region
      $region41: #{actor_forward.1} parent=39 // pred_check
        %p228 = pneg %p33
      $region42: #{actor_forward.1} parent=39 // pred_check_branch
        %230 = sbr.rel (%p228) target = $region44
      $region43: #{actor_forward.1} parent=39 // pred_region
        %s231 = smul.u32 16, %s13
        %p232 = scmp.lt.s32.totalorder %s231, 63
        %s233 = scalar_select %p232, %s231, 63
        %s234 = smul.addr %s233, 4
        %s235 = scalar_lea.vmem %s0, %s234
        %s236 = smul.u32 16, %s13
      $region44: #{actor_forward.1} parent=39 // pred_fallthru
        _
    $region40: #{actor_forward.1} parent=5 // pred_fallthru
      _
    %p237 = scmp.le.s32.totalorder 1, %s13
    %p238 = scmp.lt.s32.totalorder %s13, 5
    %p239 = pnand %p237, %p238
    %p240 = pneg %p239
    // Predicated region
    $region45: #{actor_forward.1} parent=5 // pred_check
      _
    $region46: #{actor_forward.1} parent=5 // pred_check_branch
      %242 = sbr.rel (%p239) target = $region48
    $region47: #{actor_forward.1} parent=5 // pred_region
      %s243 = ssub.s32 %s13, 1
      %s244 = smul.u32 16, %s18
      %p245 = scmp.lt.s32.totalorder %s244, 63
      %s246 = scalar_select %p245, %s244, 63
      %s247 = smul.addr %s246, 4
      %s248 = scalar_lea.vmem %s0, %s247
      %p249 = pneg %p39
      %p250 = pneg %p36
      %p251 = pneg %p60
      %p252 = pneg %p57
      %p253 = pneg %p81
      %p254 = pneg %p78
      %p255 = pneg %p102
      %p256 = pneg %p99
      %p257 = pneg %p123
      %p258 = pneg %p120
      %p259 = pneg %p144
      %p260 = pneg %p141
      %p261 = pneg %p165
      %p262 = pneg %p162
      %p263 = pneg %p191
      %p264 = pneg %p188
      %s265 = smul.u32 16, %s18
      %p266 = scmp.lt.s32.totalorder %s265, 63
      %s267 = scalar_select %p266, %s265, 63
      %s268 = smul.addr %s267, 8
      %s269 = scalar_lea.vmem %s7, %s268
      %s270 = smul.u32 16, %s18
      %p271 = scmp.lt.s32.totalorder %s270, 63
      %s272 = scalar_select %p271, %s270, 63
      %s273 = smul.addr %s272, 4
      %s274 = scalar_lea.vmem %s0, %s273
      %s275 = smul.u32 16, %s18
      %s276 = smul.u32 16, %s18
      %p277 = scmp.lt.s32.totalorder %s276, 63
      %s278 = scalar_select %p277, %s276, 63
      %s279 = smul.addr %s278, 8
      %s280 = scalar_lea.vmem %s7, %s279
      %s281 = smul.u32 16, %s18
      %v283 = vld [vmem:[%s274] sm:$0xf]
      %v284 = vld [vmem:[%s274 + $0x4] sm:$0xf]
      %v285 = vld [vmem:[%s274 + $0x8] sm:$0xf]
      %v286 = vld [vmem:[%s274 + $0xc] sm:$0xf]
      %v287 = vld [vmem:[%s274 + $0x10] sm:$0xf]
      %v288 = vld [vmem:[%s274 + $0x14] sm:$0xf]
      %v289 = vld [vmem:[%s274 + $0x18] sm:$0xf]
      %v290 = vld [vmem:[%s274 + $0x1c] sm:$0xf]
      %v291 = vld [vmem:[%s274 + $0x20] sm:$0xf]
      %v292 = vld [vmem:[%s274 + $0x24] sm:$0xf]
      %v293 = vld [vmem:[%s274 + $0x28] sm:$0xf]
      %v294 = vld [vmem:[%s274 + $0x2c] sm:$0xf]
      %v295 = vld [vmem:[%s274 + $0x30] sm:$0xf]
      %v296 = vld [vmem:[%s274 + $0x34] sm:$0xf]
      %v297 = vld [vmem:[%s274 + $0x38] sm:$0xf]
      %v298 = vld [vmem:[%s274 + $0x3c] sm:$0xf]
      %v299 = vld [vmem:[%s1] sm:$0xff]
      %v300 = vld [vmem:[%s1 + $0x8] sm:$0xff]
      %v301 = vld [vmem:[%s1 + $0x10] sm:$0xff]
      %v302 = vld [vmem:[%s1 + $0x18] sm:$0xff]
      %v303 = vld [vmem:[%s1 + $0x20] sm:$0xff]
      %v304 = vld [vmem:[%s1 + $0x28] sm:$0xff]
      %v305 = vld [vmem:[%s1 + $0x30] sm:$0xff]
      %v306 = vld [vmem:[%s1 + $0x38] sm:$0xff]
      %v307 = vld [vmem:[%s1 + $0x40] sm:$0xff]
      %v308 = vld [vmem:[%s1 + $0x48] sm:$0xff]
      %v309 = vld [vmem:[%s1 + $0x50] sm:$0xff]
      %v310 = vld [vmem:[%s1 + $0x58] sm:$0xff]
      %v311 = vld [vmem:[%s1 + $0x60] sm:$0xff]
      %v312 = vld [vmem:[%s1 + $0x68] sm:$0xff]
      %v313 = vld [vmem:[%s1 + $0x70] sm:$0xff]
      %v314 = vld [vmem:[%s1 + $0x78] sm:$0xff]
      %v315 = vld [vmem:[%s2] sm:$0x3]
      %v317 = vlaneseq
      %v318 = vshrl.u32 %v317, 7
      %v319 = vsub.s32 0, %v318
      %v320 = vrot.slane %v315, %v319
      %v321 = vlaneseq
      %v322 = vshrl.u32 %v321, 7
      %v323 = vsub.s32 1, %v322
      %v324 = vrot.slane %v315, %v323
      %v343 = vunpack.c.l.b16 %v283
      %v344 = vunpack.c.l.b16 %v284
      %v345 = vunpack.c.l.b16 %v285
      %v346 = vunpack.c.l.b16 %v286
      %v347 = vunpack.c.l.b16 %v287
      %v348 = vunpack.c.l.b16 %v288
      %v349 = vunpack.c.l.b16 %v289
      %v350 = vunpack.c.l.b16 %v290
      %v351 = vunpack.c.l.b16 %v291
      %v352 = vunpack.c.l.b16 %v292
      %v353 = vunpack.c.l.b16 %v293
      %v354 = vunpack.c.l.b16 %v294
      %v355 = vunpack.c.l.b16 %v295
      %v356 = vunpack.c.l.b16 %v296
      %v357 = vunpack.c.l.b16 %v297
      %v358 = vunpack.c.l.b16 %v298
      %v359 = vpack.c.b16 %v344, %v343
      %v360 = vpack.c.b16 %v346, %v345
      %v361 = vpack.c.b16 %v348, %v347
      %v362 = vpack.c.b16 %v350, %v349
      %v363 = vpack.c.b16 %v352, %v351
      %v364 = vpack.c.b16 %v354, %v353
      %v365 = vpack.c.b16 %v356, %v355
      %v366 = vpack.c.b16 %v358, %v357
      %v391 = vunpack.c.l.b16 %v299
      %v392 = vunpack.c.h.b16 %v299
      %v393 = vunpack.c.l.b16 %v300
      %v394 = vunpack.c.h.b16 %v300
      %v395 = vunpack.c.l.b16 %v301
      %v396 = vunpack.c.h.b16 %v301
      %v397 = vunpack.c.l.b16 %v302
      %v398 = vunpack.c.h.b16 %v302
      %v399 = vunpack.c.l.b16 %v303
      %v400 = vunpack.c.h.b16 %v303
      %v401 = vunpack.c.l.b16 %v304
      %v402 = vunpack.c.h.b16 %v304
      %v403 = vunpack.c.l.b16 %v305
      %v404 = vunpack.c.h.b16 %v305
      %v405 = vunpack.c.l.b16 %v306
      %v406 = vunpack.c.h.b16 %v306
      %v407 = vunpack.c.l.b16 %v307
      %v408 = vunpack.c.h.b16 %v307
      %v409 = vunpack.c.l.b16 %v308
      %v410 = vunpack.c.h.b16 %v308
      %v411 = vunpack.c.l.b16 %v309
      %v412 = vunpack.c.h.b16 %v309
      %v413 = vunpack.c.l.b16 %v310
      %v414 = vunpack.c.h.b16 %v310
      %v415 = vunpack.c.l.b16 %v311
      %v416 = vunpack.c.h.b16 %v311
      %v417 = vunpack.c.l.b16 %v312
      %v418 = vunpack.c.h.b16 %v312
      %v419 = vunpack.c.l.b16 %v313
      %v420 = vunpack.c.h.b16 %v313
      %v421 = vunpack.c.l.b16 %v314
      %v422 = vunpack.c.h.b16 %v314
      %v423 = vpack.c.b16 %v393, %v391
      %v424 = vpack.c.b16 %v394, %v392
      %v425 = vpack.c.b16 %v397, %v395
      %v426 = vpack.c.b16 %v398, %v396
      %v427 = vpack.c.b16 %v401, %v399
      %v428 = vpack.c.b16 %v402, %v400
      %v429 = vpack.c.b16 %v405, %v403
      %v430 = vpack.c.b16 %v406, %v404
      %v431 = vpack.c.b16 %v409, %v407
      %v432 = vpack.c.b16 %v410, %v408
      %v433 = vpack.c.b16 %v413, %v411
      %v434 = vpack.c.b16 %v414, %v412
      %v435 = vpack.c.b16 %v417, %v415
      %v436 = vpack.c.b16 %v418, %v416
      %v437 = vpack.c.b16 %v421, %v419
      %v438 = vpack.c.b16 %v422, %v420
      %455 = vmatprep.subr.bf16.mxu0 %v424
      %456 = vmatpush1.bf16.msra.mxu0 %v423
      %457 = vmatprep.subr.bf16.mxu0 %v426
      %458 = vmatpush1.bf16.msra.mxu0 %v425
      %459 = vmatprep.subr.bf16.mxu0 %v428
      %460 = vmatpush1.bf16.msra.mxu0 %v427
      %461 = vmatprep.subr.bf16.mxu0 %v430
      %462 = vmatpush1.bf16.msra.mxu0 %v429
      %463 = vmatprep.subr.bf16.mxu0 %v432
      %464 = vmatpush1.bf16.msra.mxu0 %v431
      %465 = vmatprep.subr.bf16.mxu0 %v434
      %466 = vmatpush1.bf16.msra.mxu0 %v433
      %467 = vmatprep.subr.bf16.mxu0 %v436
      %468 = vmatpush1.bf16.msra.mxu0 %v435
      %469 = vmatprep.subr.bf16.mxu0 %v438
      %470 = vmatpush1.bf16.msra.mxu0 %v437
      %471 = vmatprep.subr.bf16.mxu0 0
      %472 = vmatpush1.bf16.msra.mxu0 0
      %473 = vmatprep.subr.bf16.mxu0 0
      %474 = vmatpush1.bf16.msra.mxu0 0
      %475 = vmatprep.subr.bf16.mxu0 0
      %476 = vmatpush1.bf16.msra.mxu0 0
      %477 = vmatprep.subr.bf16.mxu0 0
      %478 = vmatpush1.bf16.msra.mxu0 0
      %479 = vmatprep.subr.bf16.mxu0 0
      %480 = vmatpush1.bf16.msra.mxu0 0
      %481 = vmatprep.subr.bf16.mxu0 0
      %482 = vmatpush1.bf16.msra.mxu0 0
      %483 = vmatprep.subr.bf16.mxu0 0
      %484 = vmatpush1.bf16.msra.mxu0 0
      %485 = vmatprep.subr.bf16.mxu0 0
      %486 = vmatpush1.bf16.msra.mxu0 0
      %487 = vmatprep.mubr.bf16.mxu0 0
      %488 = vmatmul.mubr.bf16.gmra.mrb[0].mxu0 %v359
      %v489 = vpop.f32.mrb[0].mxu0
      %v490 = vadd.f32 %v320, %v489
      %v491 = vpop.f32.mrb[0].mxu0
      %v492 = vadd.f32 %v324, %v491
      %v493 = vpop.f32.mrb[0].mxu0
      %v494 = vadd.f32 %v320, %v493
      %v495 = vpop.f32.mrb[0].mxu0
      %v496 = vadd.f32 %v324, %v495
      %497 = vmatprep.mubr.bf16.mxu0 0
      %498 = vmatmul.mubr.bf16.gmra.mrb[0].mxu0 %v360
      %v499 = vpop.f32.mrb[0].mxu0
      %v500 = vadd.f32 %v320, %v499
      %v501 = vpop.f32.mrb[0].mxu0
      %v502 = vadd.f32 %v324, %v501
      %v503 = vpop.f32.mrb[0].mxu0
      %v504 = vadd.f32 %v320, %v503
      %v505 = vpop.f32.mrb[0].mxu0
      %v506 = vadd.f32 %v324, %v505
      %507 = vmatprep.mubr.bf16.mxu0 0
      %508 = vmatmul.mubr.bf16.gmra.mrb[0].mxu0 %v361
      %v509 = vpop.f32.mrb[0].mxu0
      %v510 = vadd.f32 %v320, %v509
      %v511 = vpop.f32.mrb[0].mxu0
      %v512 = vadd.f32 %v324, %v511
      %v513 = vpop.f32.mrb[0].mxu0
      %v514 = vadd.f32 %v320, %v513
      %v515 = vpop.f32.mrb[0].mxu0
      %v516 = vadd.f32 %v324, %v515
      %517 = vmatprep.mubr.bf16.mxu0 0
      %518 = vmatmul.mubr.bf16.gmra.mrb[0].mxu0 %v362
      %v519 = vpop.f32.mrb[0].mxu0
      %v520 = vadd.f32 %v320, %v519
      %v521 = vpop.f32.mrb[0].mxu0
      %v522 = vadd.f32 %v324, %v521
      %v523 = vpop.f32.mrb[0].mxu0
      %v524 = vadd.f32 %v320, %v523
      %v525 = vpop.f32.mrb[0].mxu0
      %v526 = vadd.f32 %v324, %v525
      %527 = vmatprep.mubr.bf16.mxu0 0
      %528 = vmatmul.mubr.bf16.gmra.mrb[0].mxu0 %v363
      %v529 = vpop.f32.mrb[0].mxu0
      %v530 = vadd.f32 %v320, %v529
      %v531 = vpop.f32.mrb[0].mxu0
      %v532 = vadd.f32 %v324, %v531
      %v533 = vpop.f32.mrb[0].mxu0
      %v534 = vadd.f32 %v320, %v533
      %v535 = vpop.f32.mrb[0].mxu0
      %v536 = vadd.f32 %v324, %v535
      %537 = vmatprep.mubr.bf16.mxu0 0
      %538 = vmatmul.mubr.bf16.gmra.mrb[0].mxu0 %v364
      %v539 = vpop.f32.mrb[0].mxu0
      %v540 = vadd.f32 %v320, %v539
      %v541 = vpop.f32.mrb[0].mxu0
      %v542 = vadd.f32 %v324, %v541
      %v543 = vpop.f32.mrb[0].mxu0
      %v544 = vadd.f32 %v320, %v543
      %v545 = vpop.f32.mrb[0].mxu0
      %v546 = vadd.f32 %v324, %v545
      %547 = vmatprep.mubr.bf16.mxu0 0
      %548 = vmatmul.mubr.bf16.gmra.mrb[0].mxu0 %v365
      %v549 = vpop.f32.mrb[0].mxu0
      %v550 = vadd.f32 %v320, %v549
      %v551 = vpop.f32.mrb[0].mxu0
      %v552 = vadd.f32 %v324, %v551
      %v553 = vpop.f32.mrb[0].mxu0
      %v554 = vadd.f32 %v320, %v553
      %v555 = vpop.f32.mrb[0].mxu0
      %v556 = vadd.f32 %v324, %v555
      %557 = vmatprep.mubr.bf16.mxu0 0
      %558 = vmatmul.mubr.bf16.gmra.mrb[0].mxu0 %v366
      %v559 = vpop.f32.mrb[0].mxu0
      %v560 = vadd.f32 %v320, %v559
      %v561 = vpop.f32.mrb[0].mxu0
      %v562 = vadd.f32 %v324, %v561
      %v563 = vpop.f32.mrb[0].mxu0
      %v564 = vadd.f32 %v320, %v563
      %v565 = vpop.f32.mrb[0].mxu0
      %v566 = vadd.f32 %v324, %v565
      %567 = vdwg.mxu0
      %v568 = vmax.f32 %v490, 0.0
      %v569 = vmax.f32 %v492, 0.0
      %v570 = vmax.f32 %v494, 0.0
      %v571 = vmax.f32 %v496, 0.0
      %v572 = vmax.f32 %v500, 0.0
      %v573 = vmax.f32 %v502, 0.0
      %v574 = vmax.f32 %v504, 0.0
      %v575 = vmax.f32 %v506, 0.0
      %v576 = vmax.f32 %v510, 0.0
      %v577 = vmax.f32 %v512, 0.0
      %v578 = vmax.f32 %v514, 0.0
      %v579 = vmax.f32 %v516, 0.0
      %v580 = vmax.f32 %v520, 0.0
      %v581 = vmax.f32 %v522, 0.0
      %v582 = vmax.f32 %v524, 0.0
      %v583 = vmax.f32 %v526, 0.0
      %v584 = vmax.f32 %v530, 0.0
      %v585 = vmax.f32 %v532, 0.0
      %v586 = vmax.f32 %v534, 0.0
      %v587 = vmax.f32 %v536, 0.0
      %v588 = vmax.f32 %v540, 0.0
      %v589 = vmax.f32 %v542, 0.0
      %v590 = vmax.f32 %v544, 0.0
      %v591 = vmax.f32 %v546, 0.0
      %v592 = vmax.f32 %v550, 0.0
      %v593 = vmax.f32 %v552, 0.0
      %v594 = vmax.f32 %v554, 0.0
      %v595 = vmax.f32 %v556, 0.0
      %v596 = vmax.f32 %v560, 0.0
      %v597 = vmax.f32 %v562, 0.0
      %v598 = vmax.f32 %v564, 0.0
      %v599 = vmax.f32 %v566, 0.0
      %v600 = vpack.c.bf16 %v570, %v568
      %v601 = vpack.c.bf16 %v571, %v569
      %v602 = vpack.c.bf16 %v574, %v572
      %v603 = vpack.c.bf16 %v575, %v573
      %v604 = vpack.c.bf16 %v578, %v576
      %v605 = vpack.c.bf16 %v579, %v577
      %v606 = vpack.c.bf16 %v582, %v580
      %v607 = vpack.c.bf16 %v583, %v581
      %v608 = vpack.c.bf16 %v586, %v584
      %v609 = vpack.c.bf16 %v587, %v585
      %v610 = vpack.c.bf16 %v590, %v588
      %v611 = vpack.c.bf16 %v591, %v589
      %v612 = vpack.c.bf16 %v594, %v592
      %v613 = vpack.c.bf16 %v595, %v593
      %v614 = vpack.c.bf16 %v598, %v596
      %v615 = vpack.c.bf16 %v599, %v597
      %v616 = vld [vmem:[%s3] sm:$0xff]
      %v617 = vld [vmem:[%s3 + $0x8] sm:$0xff]
      %v618 = vld [vmem:[%s3 + $0x10] sm:$0xff]
      %v619 = vld [vmem:[%s3 + $0x18] sm:$0xff]
      %v620 = vld [vmem:[%s3 + $0x20] sm:$0xff]
      %v621 = vld [vmem:[%s3 + $0x28] sm:$0xff]
      %v622 = vld [vmem:[%s3 + $0x30] sm:$0xff]
      %v623 = vld [vmem:[%s3 + $0x38] sm:$0xff]
      %v624 = vld [vmem:[%s3 + $0x40] sm:$0xff]
      %v625 = vld [vmem:[%s3 + $0x48] sm:$0xff]
      %v626 = vld [vmem:[%s3 + $0x50] sm:$0xff]
      %v627 = vld [vmem:[%s3 + $0x58] sm:$0xff]
      %v628 = vld [vmem:[%s3 + $0x60] sm:$0xff]
      %v629 = vld [vmem:[%s3 + $0x68] sm:$0xff]
      %v630 = vld [vmem:[%s3 + $0x70] sm:$0xff]
      %v631 = vld [vmem:[%s3 + $0x78] sm:$0xff]
      %v632 = vld [vmem:[%s3 + $0x80] sm:$0xff]
      %v633 = vld [vmem:[%s3 + $0x88] sm:$0xff]
      %v634 = vld [vmem:[%s3 + $0x90] sm:$0xff]
      %v635 = vld [vmem:[%s3 + $0x98] sm:$0xff]
      %v636 = vld [vmem:[%s3 + $0xa0] sm:$0xff]
      %v637 = vld [vmem:[%s3 + $0xa8] sm:$0xff]
      %v638 = vld [vmem:[%s3 + $0xb0] sm:$0xff]
      %v639 = vld [vmem:[%s3 + $0xb8] sm:$0xff]
      %v640 = vld [vmem:[%s3 + $0xc0] sm:$0xff]
      %v641 = vld [vmem:[%s3 + $0xc8] sm:$0xff]
      %v642 = vld [vmem:[%s3 + $0xd0] sm:$0xff]
      %v643 = vld [vmem:[%s3 + $0xd8] sm:$0xff]
      %v644 = vld [vmem:[%s3 + $0xe0] sm:$0xff]
      %v645 = vld [vmem:[%s3 + $0xe8] sm:$0xff]
      %v646 = vld [vmem:[%s3 + $0xf0] sm:$0xff]
      %v647 = vld [vmem:[%s3 + $0xf8] sm:$0xff]
      %v648 = vld [vmem:[%s4] sm:$0x3]
      %v650 = vlaneseq
      %v651 = vshrl.u32 %v650, 7
      %v652 = vsub.s32 0, %v651
      %v653 = vrot.slane %v648, %v652
      %v654 = vlaneseq
      %v655 = vshrl.u32 %v654, 7
      %v656 = vsub.s32 1, %v655
      %v657 = vrot.slane %v648, %v656
      %v692 = vunpack.c.l.b16 %v616
      %v693 = vunpack.c.h.b16 %v616
      %v694 = vunpack.c.l.b16 %v617
      %v695 = vunpack.c.h.b16 %v617
      %v696 = vunpack.c.l.b16 %v618
      %v697 = vunpack.c.h.b16 %v618
      %v698 = vunpack.c.l.b16 %v619
      %v699 = vunpack.c.h.b16 %v619
      %v700 = vunpack.c.l.b16 %v620
      %v701 = vunpack.c.h.b16 %v620
      %v702 = vunpack.c.l.b16 %v621
      %v703 = vunpack.c.h.b16 %v621
      %v704 = vunpack.c.l.b16 %v622
      %v705 = vunpack.c.h.b16 %v622
      %v706 = vunpack.c.l.b16 %v623
      %v707 = vunpack.c.h.b16 %v623
      %v708 = vunpack.c.l.b16 %v624
      %v709 = vunpack.c.h.b16 %v624
      %v710 = vunpack.c.l.b16 %v625
      %v711 = vunpack.c.h.b16 %v625
      %v712 = vunpack.c.l.b16 %v626
      %v713 = vunpack.c.h.b16 %v626
      %v714 = vunpack.c.l.b16 %v627
      %v715 = vunpack.c.h.b16 %v627
      %v716 = vunpack.c.l.b16 %v628
      %v717 = vunpack.c.h.b16 %v628
      %v718 = vunpack.c.l.b16 %v629
      %v719 = vunpack.c.h.b16 %v629
      %v720 = vunpack.c.l.b16 %v630
      %v721 = vunpack.c.h.b16 %v630
      %v722 = vunpack.c.l.b16 %v631
      %v723 = vunpack.c.h.b16 %v631
      %v724 = vunpack.c.l.b16 %v632
      %v725 = vunpack.c.h.b16 %v632
      %v726 = vunpack.c.l.b16 %v633
      %v727 = vunpack.c.h.b16 %v633
      %v728 = vunpack.c.l.b16 %v634
      %v729 = vunpack.c.h.b16 %v634
      %v730 = vunpack.c.l.b16 %v635
      %v731 = vunpack.c.h.b16 %v635
      %v732 = vunpack.c.l.b16 %v636
      %v733 = vunpack.c.h.b16 %v636
      %v734 = vunpack.c.l.b16 %v637
      %v735 = vunpack.c.h.b16 %v637
      %v736 = vunpack.c.l.b16 %v638
      %v737 = vunpack.c.h.b16 %v638
      %v738 = vunpack.c.l.b16 %v639
      %v739 = vunpack.c.h.b16 %v639
      %v740 = vunpack.c.l.b16 %v640
      %v741 = vunpack.c.h.b16 %v640
      %v742 = vunpack.c.l.b16 %v641
      %v743 = vunpack.c.h.b16 %v641
      %v744 = vunpack.c.l.b16 %v642
      %v745 = vunpack.c.h.b16 %v642
      %v746 = vunpack.c.l.b16 %v643
      %v747 = vunpack.c.h.b16 %v643
      %v748 = vunpack.c.l.b16 %v644
      %v749 = vunpack.c.h.b16 %v644
      %v750 = vunpack.c.l.b16 %v645
      %v751 = vunpack.c.h.b16 %v645
      %v752 = vunpack.c.l.b16 %v646
      %v753 = vunpack.c.h.b16 %v646
      %v754 = vunpack.c.l.b16 %v647
      %v755 = vunpack.c.h.b16 %v647
      %v756 = vpack.c.b16 %v694, %v692
      %v757 = vpack.c.b16 %v695, %v693
      %v758 = vpack.c.b16 %v698, %v696
      %v759 = vpack.c.b16 %v699, %v697
      %v760 = vpack.c.b16 %v702, %v700
      %v761 = vpack.c.b16 %v703, %v701
      %v762 = vpack.c.b16 %v706, %v704
      %v763 = vpack.c.b16 %v707, %v705
      %v764 = vpack.c.b16 %v710, %v708
      %v765 = vpack.c.b16 %v711, %v709
      %v766 = vpack.c.b16 %v714, %v712
      %v767 = vpack.c.b16 %v715, %v713
      %v768 = vpack.c.b16 %v718, %v716
      %v769 = vpack.c.b16 %v719, %v717
      %v770 = vpack.c.b16 %v722, %v720
      %v771 = vpack.c.b16 %v723, %v721
      %v772 = vpack.c.b16 %v726, %v724
      %v773 = vpack.c.b16 %v727, %v725
      %v774 = vpack.c.b16 %v730, %v728
      %v775 = vpack.c.b16 %v731, %v729
      %v776 = vpack.c.b16 %v734, %v732
      %v777 = vpack.c.b16 %v735, %v733
      %v778 = vpack.c.b16 %v738, %v736
      %v779 = vpack.c.b16 %v739, %v737
      %v780 = vpack.c.b16 %v742, %v740
      %v781 = vpack.c.b16 %v743, %v741
      %v782 = vpack.c.b16 %v746, %v744
      %v783 = vpack.c.b16 %v747, %v745
      %v784 = vpack.c.b16 %v750, %v748
      %v785 = vpack.c.b16 %v751, %v749
      %v786 = vpack.c.b16 %v754, %v752
      %v787 = vpack.c.b16 %v755, %v753
      %820 = vmatprep.subr.bf16.mxu0 %v757
      %821 = vmatpush1.bf16.msra.mxu0 %v756
      %822 = vmatprep.subr.bf16.mxu0 %v759
      %823 = vmatpush1.bf16.msra.mxu0 %v758
      %824 = vmatprep.subr.bf16.mxu0 %v761
      %825 = vmatpush1.bf16.msra.mxu0 %v760
      %826 = vmatprep.subr.bf16.mxu0 %v763
      %827 = vmatpush1.bf16.msra.mxu0 %v762
      %828 = vmatprep.subr.bf16.mxu0 %v765
      %829 = vmatpush1.bf16.msra.mxu0 %v764
      %830 = vmatprep.subr.bf16.mxu0 %v767
      %831 = vmatpush1.bf16.msra.mxu0 %v766
      %832 = vmatprep.subr.bf16.mxu0 %v769
      %833 = vmatpush1.bf16.msra.mxu0 %v768
      %834 = vmatprep.subr.bf16.mxu0 %v771
      %835 = vmatpush1.bf16.msra.mxu0 %v770
      %836 = vmatprep.subr.bf16.mxu0 %v773
      %837 = vmatpush1.bf16.msra.mxu0 %v772
      %838 = vmatprep.subr.bf16.mxu0 %v775
      %839 = vmatpush1.bf16.msra.mxu0 %v774
      %840 = vmatprep.subr.bf16.mxu0 %v777
      %841 = vmatpush1.bf16.msra.mxu0 %v776
      %842 = vmatprep.subr.bf16.mxu0 %v779
      %843 = vmatpush1.bf16.msra.mxu0 %v778
      %844 = vmatprep.subr.bf16.mxu0 %v781
      %845 = vmatpush1.bf16.msra.mxu0 %v780
      %846 = vmatprep.subr.bf16.mxu0 %v783
      %847 = vmatpush1.bf16.msra.mxu0 %v782
      %848 = vmatprep.subr.bf16.mxu0 %v785
      %849 = vmatpush1.bf16.msra.mxu0 %v784
      %850 = vmatprep.subr.bf16.mxu0 %v787
      %851 = vmatpush1.bf16.msra.mxu0 %v786
      %852 = vmatprep.mubr.bf16.mxu0 %v601
      %853 = vmatmul.mubr.bf16.gmra.mrb[0].mxu0 %v600
      %v854 = vpop.f32.mrb[0].mxu0
      %v855 = vadd.f32 %v653, %v854
      %v856 = vpop.f32.mrb[0].mxu0
      %v857 = vadd.f32 %v657, %v856
      %v858 = vpop.f32.mrb[0].mxu0
      %v859 = vadd.f32 %v653, %v858
      %v860 = vpop.f32.mrb[0].mxu0
      %v861 = vadd.f32 %v657, %v860
      %862 = vmatprep.mubr.bf16.mxu0 %v603
      %863 = vmatmul.mubr.bf16.gmra.mrb[0].mxu0 %v602
      %v864 = vpop.f32.mrb[0].mxu0
      %v865 = vadd.f32 %v653, %v864
      %v866 = vpop.f32.mrb[0].mxu0
      %v867 = vadd.f32 %v657, %v866
      %v868 = vpop.f32.mrb[0].mxu0
      %v869 = vadd.f32 %v653, %v868
      %v870 = vpop.f32.mrb[0].mxu0
      %v871 = vadd.f32 %v657, %v870
      %872 = vmatprep.mubr.bf16.mxu0 %v605
      %873 = vmatmul.mubr.bf16.gmra.mrb[0].mxu0 %v604
      %v874 = vpop.f32.mrb[0].mxu0
      %v875 = vadd.f32 %v653, %v874
      %v876 = vpop.f32.mrb[0].mxu0
      %v877 = vadd.f32 %v657, %v876
      %v878 = vpop.f32.mrb[0].mxu0
      %v879 = vadd.f32 %v653, %v878
      %v880 = vpop.f32.mrb[0].mxu0
      %v881 = vadd.f32 %v657, %v880
      %882 = vmatprep.mubr.bf16.mxu0 %v607
      %883 = vmatmul.mubr.bf16.gmra.mrb[0].mxu0 %v606
      %v884 = vpop.f32.mrb[0].mxu0
      %v885 = vadd.f32 %v653, %v884
      %v886 = vpop.f32.mrb[0].mxu0
      %v887 = vadd.f32 %v657, %v886
      %v888 = vpop.f32.mrb[0].mxu0
      %v889 = vadd.f32 %v653, %v888
      %v890 = vpop.f32.mrb[0].mxu0
      %v891 = vadd.f32 %v657, %v890
      %892 = vmatprep.mubr.bf16.mxu0 %v609
      %893 = vmatmul.mubr.bf16.gmra.mrb[0].mxu0 %v608
      %v894 = vpop.f32.mrb[0].mxu0
      %v895 = vadd.f32 %v653, %v894
      %v896 = vpop.f32.mrb[0].mxu0
      %v897 = vadd.f32 %v657, %v896
      %v898 = vpop.f32.mrb[0].mxu0
      %v899 = vadd.f32 %v653, %v898
      %v900 = vpop.f32.mrb[0].mxu0
      %v901 = vadd.f32 %v657, %v900
      %902 = vmatprep.mubr.bf16.mxu0 %v611
      %903 = vmatmul.mubr.bf16.gmra.mrb[0].mxu0 %v610
      %v904 = vpop.f32.mrb[0].mxu0
      %v905 = vadd.f32 %v653, %v904
      %v906 = vpop.f32.mrb[0].mxu0
      %v907 = vadd.f32 %v657, %v906
      %v908 = vpop.f32.mrb[0].mxu0
      %v909 = vadd.f32 %v653, %v908
      %v910 = vpop.f32.mrb[0].mxu0
      %v911 = vadd.f32 %v657, %v910
      %912 = vmatprep.mubr.bf16.mxu0 %v613
      %913 = vmatmul.mubr.bf16.gmra.mrb[0].mxu0 %v612
      %v914 = vpop.f32.mrb[0].mxu0
      %v915 = vadd.f32 %v653, %v914
      %v916 = vpop.f32.mrb[0].mxu0
      %v917 = vadd.f32 %v657, %v916
      %v918 = vpop.f32.mrb[0].mxu0
      %v919 = vadd.f32 %v653, %v918
      %v920 = vpop.f32.mrb[0].mxu0
      %v921 = vadd.f32 %v657, %v920
      %922 = vmatprep.mubr.bf16.mxu0 %v615
      %923 = vmatmul.mubr.bf16.gmra.mrb[0].mxu0 %v614
      %v924 = vpop.f32.mrb[0].mxu0
      %v925 = vadd.f32 %v653, %v924
      %v926 = vpop.f32.mrb[0].mxu0
      %v927 = vadd.f32 %v657, %v926
      %v928 = vpop.f32.mrb[0].mxu0
      %v929 = vadd.f32 %v653, %v928
      %v930 = vpop.f32.mrb[0].mxu0
      %v931 = vadd.f32 %v657, %v930
      %932 = vdwg.mxu0
      %v933 = vmax.f32 %v855, 0.0
      %v934 = vmax.f32 %v857, 0.0
      %v935 = vmax.f32 %v859, 0.0
      %v936 = vmax.f32 %v861, 0.0
      %v937 = vmax.f32 %v865, 0.0
      %v938 = vmax.f32 %v867, 0.0
      %v939 = vmax.f32 %v869, 0.0
      %v940 = vmax.f32 %v871, 0.0
      %v941 = vmax.f32 %v875, 0.0
      %v942 = vmax.f32 %v877, 0.0
      %v943 = vmax.f32 %v879, 0.0
      %v944 = vmax.f32 %v881, 0.0
      %v945 = vmax.f32 %v885, 0.0
      %v946 = vmax.f32 %v887, 0.0
      %v947 = vmax.f32 %v889, 0.0
      %v948 = vmax.f32 %v891, 0.0
      %v949 = vmax.f32 %v895, 0.0
      %v950 = vmax.f32 %v897, 0.0
      %v951 = vmax.f32 %v899, 0.0
      %v952 = vmax.f32 %v901, 0.0
      %v953 = vmax.f32 %v905, 0.0
      %v954 = vmax.f32 %v907, 0.0
      %v955 = vmax.f32 %v909, 0.0
      %v956 = vmax.f32 %v911, 0.0
      %v957 = vmax.f32 %v915, 0.0
      %v958 = vmax.f32 %v917, 0.0
      %v959 = vmax.f32 %v919, 0.0
      %v960 = vmax.f32 %v921, 0.0
      %v961 = vmax.f32 %v925, 0.0
      %v962 = vmax.f32 %v927, 0.0
      %v963 = vmax.f32 %v929, 0.0
      %v964 = vmax.f32 %v931, 0.0
      %v965 = vpack.c.bf16 %v935, %v933
      %v966 = vpack.c.bf16 %v936, %v934
      %v967 = vpack.c.bf16 %v939, %v937
      %v968 = vpack.c.bf16 %v940, %v938
      %v969 = vpack.c.bf16 %v943, %v941
      %v970 = vpack.c.bf16 %v944, %v942
      %v971 = vpack.c.bf16 %v947, %v945
      %v972 = vpack.c.bf16 %v948, %v946
      %v973 = vpack.c.bf16 %v951, %v949
      %v974 = vpack.c.bf16 %v952, %v950
      %v975 = vpack.c.bf16 %v955, %v953
      %v976 = vpack.c.bf16 %v956, %v954
      %v977 = vpack.c.bf16 %v959, %v957
      %v978 = vpack.c.bf16 %v960, %v958
      %v979 = vpack.c.bf16 %v963, %v961
      %v980 = vpack.c.bf16 %v964, %v962
      %v981 = vld [vmem:[%s5] sm:$0xf]
      %v982 = vld [vmem:[%s5 + $0x4] sm:$0xf]
      %v983 = vld [vmem:[%s5 + $0x8] sm:$0xf]
      %v984 = vld [vmem:[%s5 + $0xc] sm:$0xf]
      %v985 = vld [vmem:[%s5 + $0x10] sm:$0xf]
      %v986 = vld [vmem:[%s5 + $0x14] sm:$0xf]
      %v987 = vld [vmem:[%s5 + $0x18] sm:$0xf]
      %v988 = vld [vmem:[%s5 + $0x1c] sm:$0xf]
      %v989 = vld [vmem:[%s5 + $0x20] sm:$0xf]
      %v990 = vld [vmem:[%s5 + $0x24] sm:$0xf]
      %v991 = vld [vmem:[%s5 + $0x28] sm:$0xf]
      %v992 = vld [vmem:[%s5 + $0x2c] sm:$0xf]
      %v993 = vld [vmem:[%s5 + $0x30] sm:$0xf]
      %v994 = vld [vmem:[%s5 + $0x34] sm:$0xf]
      %v995 = vld [vmem:[%s5 + $0x38] sm:$0xf]
      %v996 = vld [vmem:[%s5 + $0x3c] sm:$0xf]
      %v997 = vld [vmem:[%s5 + $0x40] sm:$0xf]
      %v998 = vld [vmem:[%s5 + $0x44] sm:$0xf]
      %v999 = vld [vmem:[%s5 + $0x48] sm:$0xf]
      %v1000 = vld [vmem:[%s5 + $0x4c] sm:$0xf]
      %v1001 = vld [vmem:[%s5 + $0x50] sm:$0xf]
      %v1002 = vld [vmem:[%s5 + $0x54] sm:$0xf]
      %v1003 = vld [vmem:[%s5 + $0x58] sm:$0xf]
      %v1004 = vld [vmem:[%s5 + $0x5c] sm:$0xf]
      %v1005 = vld [vmem:[%s5 + $0x60] sm:$0xf]
      %v1006 = vld [vmem:[%s5 + $0x64] sm:$0xf]
      %v1007 = vld [vmem:[%s5 + $0x68] sm:$0xf]
      %v1008 = vld [vmem:[%s5 + $0x6c] sm:$0xf]
      %v1009 = vld [vmem:[%s5 + $0x70] sm:$0xf]
      %v1010 = vld [vmem:[%s5 + $0x74] sm:$0xf]
      %v1011 = vld [vmem:[%s5 + $0x78] sm:$0xf]
      %v1012 = vld [vmem:[%s5 + $0x7c] sm:$0xf]
      %v1013 = vld [vmem:[%s6] sm:$0x1]
      %v1015 = vlaneseq
      %v1016 = vshrl.u32 %v1015, 7
      %v1017 = vsub.s32 0, %v1016
      %v1018 = vrot.slane %v1013, %v1017
      %v1052 = vunpack.c.l.b16 %v981
      %v1053 = vunpack.c.l.b16 %v982
      %v1054 = vunpack.c.l.b16 %v983
      %v1055 = vunpack.c.l.b16 %v984
      %v1056 = vunpack.c.l.b16 %v985
      %v1057 = vunpack.c.l.b16 %v986
      %v1058 = vunpack.c.l.b16 %v987
      %v1059 = vunpack.c.l.b16 %v988
      %v1060 = vunpack.c.l.b16 %v989
      %v1061 = vunpack.c.l.b16 %v990
      %v1062 = vunpack.c.l.b16 %v991
      %v1063 = vunpack.c.l.b16 %v992
      %v1064 = vunpack.c.l.b16 %v993
      %v1065 = vunpack.c.l.b16 %v994
      %v1066 = vunpack.c.l.b16 %v995
      %v1067 = vunpack.c.l.b16 %v996
      %v1068 = vunpack.c.l.b16 %v997
      %v1069 = vunpack.c.l.b16 %v998
      %v1070 = vunpack.c.l.b16 %v999
      %v1071 = vunpack.c.l.b16 %v1000
      %v1072 = vunpack.c.l.b16 %v1001
      %v1073 = vunpack.c.l.b16 %v1002
      %v1074 = vunpack.c.l.b16 %v1003
      %v1075 = vunpack.c.l.b16 %v1004
      %v1076 = vunpack.c.l.b16 %v1005
      %v1077 = vunpack.c.l.b16 %v1006
      %v1078 = vunpack.c.l.b16 %v1007
      %v1079 = vunpack.c.l.b16 %v1008
      %v1080 = vunpack.c.l.b16 %v1009
      %v1081 = vunpack.c.l.b16 %v1010
      %v1082 = vunpack.c.l.b16 %v1011
      %v1083 = vunpack.c.l.b16 %v1012
      %v1084 = vpack.c.b16 %v1053, %v1052
      %v1085 = vpack.c.b16 %v1055, %v1054
      %v1086 = vpack.c.b16 %v1057, %v1056
      %v1087 = vpack.c.b16 %v1059, %v1058
      %v1088 = vpack.c.b16 %v1061, %v1060
      %v1089 = vpack.c.b16 %v1063, %v1062
      %v1090 = vpack.c.b16 %v1065, %v1064
      %v1091 = vpack.c.b16 %v1067, %v1066
      %v1092 = vpack.c.b16 %v1069, %v1068
      %v1093 = vpack.c.b16 %v1071, %v1070
      %v1094 = vpack.c.b16 %v1073, %v1072
      %v1095 = vpack.c.b16 %v1075, %v1074
      %v1096 = vpack.c.b16 %v1077, %v1076
      %v1097 = vpack.c.b16 %v1079, %v1078
      %v1098 = vpack.c.b16 %v1081, %v1080
      %v1099 = vpack.c.b16 %v1083, %v1082
      %1116 = vmatprep.subr.bf16.mxu0 0
      %1117 = vmatpush1.bf16.msra.mxu0 %v1084
      %1118 = vmatprep.subr.bf16.mxu0 0
      %1119 = vmatpush1.bf16.msra.mxu0 %v1085
      %1120 = vmatprep.subr.bf16.mxu0 0
      %1121 = vmatpush1.bf16.msra.mxu0 %v1086
      %1122 = vmatprep.subr.bf16.mxu0 0
      %1123 = vmatpush1.bf16.msra.mxu0 %v1087
      %1124 = vmatprep.subr.bf16.mxu0 0
      %1125 = vmatpush1.bf16.msra.mxu0 %v1088
      %1126 = vmatprep.subr.bf16.mxu0 0
      %1127 = vmatpush1.bf16.msra.mxu0 %v1089
      %1128 = vmatprep.subr.bf16.mxu0 0
      %1129 = vmatpush1.bf16.msra.mxu0 %v1090
      %1130 = vmatprep.subr.bf16.mxu0 0
      %1131 = vmatpush1.bf16.msra.mxu0 %v1091
      %1132 = vmatprep.subr.bf16.mxu0 0
      %1133 = vmatpush1.bf16.msra.mxu0 %v1092
      %1134 = vmatprep.subr.bf16.mxu0 0
      %1135 = vmatpush1.bf16.msra.mxu0 %v1093
      %1136 = vmatprep.subr.bf16.mxu0 0
      %1137 = vmatpush1.bf16.msra.mxu0 %v1094
      %1138 = vmatprep.subr.bf16.mxu0 0
      %1139 = vmatpush1.bf16.msra.mxu0 %v1095
      %1140 = vmatprep.subr.bf16.mxu0 0
      %1141 = vmatpush1.bf16.msra.mxu0 %v1096
      %1142 = vmatprep.subr.bf16.mxu0 0
      %1143 = vmatpush1.bf16.msra.mxu0 %v1097
      %1144 = vmatprep.subr.bf16.mxu0 0
      %1145 = vmatpush1.bf16.msra.mxu0 %v1098
      %1146 = vmatprep.subr.bf16.mxu0 0
      %1147 = vmatpush1.bf16.msra.mxu0 %v1099
      %1148 = vmatprep.mubr.bf16.mxu0 %v966
      %1149 = vmatmul.mubr.bf16.gmra.mrb[0].mxu0 %v965
      %v1150 = vpop.f32.mrb[0].mxu0
      %v1151 = vadd.f32 %v1018, %v1150
      %v1152 = vpop.f32.mrb[0].mxu0
      %v1153 = vpop.f32.mrb[0].mxu0
      %v1154 = vadd.f32 %v1018, %v1153
      %v1155 = vpop.f32.mrb[0].mxu0
      %1156 = vmatprep.mubr.bf16.mxu0 %v968
      %1157 = vmatmul.mubr.bf16.gmra.mrb[0].mxu0 %v967
      %v1158 = vpop.f32.mrb[0].mxu0
      %v1159 = vadd.f32 %v1018, %v1158
      %v1160 = vpop.f32.mrb[0].mxu0
      %v1161 = vpop.f32.mrb[0].mxu0
      %v1162 = vadd.f32 %v1018, %v1161
      %v1163 = vpop.f32.mrb[0].mxu0
      %1164 = vmatprep.mubr.bf16.mxu0 %v970
      %1165 = vmatmul.mubr.bf16.gmra.mrb[0].mxu0 %v969
      %v1166 = vpop.f32.mrb[0].mxu0
      %v1167 = vadd.f32 %v1018, %v1166
      %v1168 = vpop.f32.mrb[0].mxu0
      %v1169 = vpop.f32.mrb[0].mxu0
      %v1170 = vadd.f32 %v1018, %v1169
      %v1171 = vpop.f32.mrb[0].mxu0
      %1172 = vmatprep.mubr.bf16.mxu0 %v972
      %1173 = vmatmul.mubr.bf16.gmra.mrb[0].mxu0 %v971
      %v1174 = vpop.f32.mrb[0].mxu0
      %v1175 = vadd.f32 %v1018, %v1174
      %v1176 = vpop.f32.mrb[0].mxu0
      %v1177 = vpop.f32.mrb[0].mxu0
      %v1178 = vadd.f32 %v1018, %v1177
      %v1179 = vpop.f32.mrb[0].mxu0
      %1180 = vmatprep.mubr.bf16.mxu0 %v974
      %1181 = vmatmul.mubr.bf16.gmra.mrb[0].mxu0 %v973
      %v1182 = vpop.f32.mrb[0].mxu0
      %v1183 = vadd.f32 %v1018, %v1182
      %v1184 = vpop.f32.mrb[0].mxu0
      %v1185 = vpop.f32.mrb[0].mxu0
      %v1186 = vadd.f32 %v1018, %v1185
      %v1187 = vpop.f32.mrb[0].mxu0
      %1188 = vmatprep.mubr.bf16.mxu0 %v976
      %1189 = vmatmul.mubr.bf16.gmra.mrb[0].mxu0 %v975
      %v1190 = vpop.f32.mrb[0].mxu0
      %v1191 = vadd.f32 %v1018, %v1190
      %v1192 = vpop.f32.mrb[0].mxu0
      %v1193 = vpop.f32.mrb[0].mxu0
      %v1194 = vadd.f32 %v1018, %v1193
      %v1195 = vpop.f32.mrb[0].mxu0
      %1196 = vmatprep.mubr.bf16.mxu0 %v978
      %1197 = vmatmul.mubr.bf16.gmra.mrb[0].mxu0 %v977
      %v1198 = vpop.f32.mrb[0].mxu0
      %v1199 = vadd.f32 %v1018, %v1198
      %v1200 = vpop.f32.mrb[0].mxu0
      %v1201 = vpop.f32.mrb[0].mxu0
      %v1202 = vadd.f32 %v1018, %v1201
      %v1203 = vpop.f32.mrb[0].mxu0
      %1204 = vmatprep.mubr.bf16.mxu0 %v980
      %1205 = vmatmul.mubr.bf16.gmra.mrb[0].mxu0 %v979
      %v1206 = vpop.f32.mrb[0].mxu0
      %v1207 = vadd.f32 %v1018, %v1206
      %v1208 = vpop.f32.mrb[0].mxu0
      %v1209 = vpop.f32.mrb[0].mxu0
      %v1210 = vadd.f32 %v1018, %v1209
      %v1211 = vpop.f32.mrb[0].mxu0
      %1212 = vdwg.mxu0
      %v1213 = vtanh.pop %v1151
      %v1214 = vtanh.pop %v1154
      %v1215 = vtanh.pop %v1159
      %v1216 = vtanh.pop %v1162
      %v1217 = vtanh.pop %v1167
      %v1218 = vtanh.pop %v1170
      %v1219 = vtanh.pop %v1175
      %v1220 = vtanh.pop %v1178
      %v1221 = vtanh.pop %v1183
      %v1222 = vtanh.pop %v1186
      %v1223 = vtanh.pop %v1191
      %v1224 = vtanh.pop %v1194
      %v1225 = vtanh.pop %v1199
      %v1226 = vtanh.pop %v1202
      %v1227 = vtanh.pop %v1207
      %v1228 = vtanh.pop %v1210
      %1229 = vst [vmem:[%s280] sm:$0xff] %v1213
      %1230 = vst [vmem:[%s280 + $0x8] sm:$0xff] %v1214
      %1231 = vst [vmem:[%s280 + $0x10] sm:$0xff] %v1215
      %1232 = vst [vmem:[%s280 + $0x18] sm:$0xff] %v1216
      %1233 = vst [vmem:[%s280 + $0x20] sm:$0xff] %v1217
      %1234 = vst [vmem:[%s280 + $0x28] sm:$0xff] %v1218
      %1235 = vst [vmem:[%s280 + $0x30] sm:$0xff] %v1219
      %1236 = vst [vmem:[%s280 + $0x38] sm:$0xff] %v1220
      %1237 = vst [vmem:[%s280 + $0x40] sm:$0xff] %v1221
      %1238 = vst [vmem:[%s280 + $0x48] sm:$0xff] %v1222
      %1239 = vst [vmem:[%s280 + $0x50] sm:$0xff] %v1223
      %1240 = vst [vmem:[%s280 + $0x58] sm:$0xff] %v1224
      %1241 = vst [vmem:[%s280 + $0x60] sm:$0xff] %v1225
      %1242 = vst [vmem:[%s280 + $0x68] sm:$0xff] %v1226
      %1243 = vst [vmem:[%s280 + $0x70] sm:$0xff] %v1227
      %1244 = vst [vmem:[%s280 + $0x78] sm:$0xff] %v1228
      %s1245 = smul.u32 16, %s18
      %p1246 = scmp.lt.s32.totalorder %s1245, 63
      %s1247 = scalar_select %p1246, %s1245, 63
      %s1248 = smul.addr %s1247, 8
      %s1249 = scalar_lea.vmem %s7, %s1248
      // Predicated region
      $region49: #{actor_forward.1} parent=47 // pred_check
        %p1250 = pneg %p188
      $region50: #{actor_forward.1} parent=47 // pred_check_branch
        %1252 = sbr.rel (%p1250) target = $region52
      $region51: #{actor_forward.1} parent=47 // pred_region
        %s1253 = smul.u32 16, %s18
      $region52: #{actor_forward.1} parent=47 // pred_fallthru
        _
    $region48: #{actor_forward.1} parent=5 // pred_fallthru
      _
    %p1254 = scmp.le.s32.totalorder 2, %s13
    // Predicated region
    $region53: #{actor_forward.1} parent=5 // pred_check
      %p1255 = pneg %p1254
    $region54: #{actor_forward.1} parent=5 // pred_check_branch
      %1257 = sbr.rel (%p1255) target = $region56
    $region55: #{actor_forward.1} parent=5 // pred_region
      %s1258 = ssub.s32 %s13, 2
      // Predicated region
      $region57: #{actor_forward.1} parent=55 // pred_check
        %p1259 = pneg %p194
      $region58: #{actor_forward.1} parent=55 // pred_check_branch
        %1261 = sbr.rel (%p1259) target = $region60
      $region59: #{actor_forward.1} parent=55 // pred_region
        %s1262 = smul.u32 16, %s19
        %p1263 = scmp.lt.s32.totalorder %s1262, 63
        %s1264 = scalar_select %p1263, %s1262, 63
        %s1265 = smul.addr %s1264, 8
        %s1266 = scalar_lea.vmem %s7, %s1265
      $region60: #{actor_forward.1} parent=55 // pred_fallthru
        _
    $region56: #{actor_forward.1} parent=5 // pred_fallthru
      _
  $region6: #{actor_forward.1} parent=0 // loop_footer
    %s17 = sadd.s32 1, %s13
  $region7: #{actor_forward.1} parent=0 // loop_footer_branch
    %12 = sbr.rel target = $region3
  $region8: #{actor_forward.1} parent=0 // loop_exit
    _

</llo_original>
